<compile_context>
chip_gen: v6e
topology: v6e:2x2x1
jax: 0.10.0
libtpu: 0.0.40
codegen_flags: <defaults>
</compile_context>

<pallas_src>
import jax
import jax.numpy as jnp
from jax.experimental import pallas as pl
from jax.experimental.pallas import tpu as pltpu


def _round_up(a, b):
    return (a + b - 1) // b * b


def dnn_ordinal_kernel(x_ref, w1_ref, b1_ref, w2_ref, b2_ref,
                       w3_ref, b3_ref, w4_ref, bc_ref, out_ref):
    # fclayer1: Linear -> Dropout(0.25) -> ReLU
    # TODO(synk): Dropout(0.25) is stochastic at train time; implemented as eval-mode identity.
    # In-kernel bf16 cast of x (VPU, hidden under MXU) avoids a wrapper-side HBM pass.
    x = x_ref[...].astype(jnp.bfloat16)
    z = jnp.dot(x, w1_ref[...], preferred_element_type=jnp.float32) + b1_ref[...]
    z = jnp.maximum(z, 0.0)

    # fclayer2: Linear -> ReLU
    z = jnp.dot(z.astype(jnp.bfloat16), w2_ref[...],
                preferred_element_type=jnp.float32) + b2_ref[...]
    z = jnp.maximum(z, 0.0)

    # fclayer3: Linear -> ReLU
    z = jnp.dot(z.astype(jnp.bfloat16), w3_ref[...],
                preferred_element_type=jnp.float32) + b3_ref[...]
    z = jnp.maximum(z, 0.0)

    # fclayer4 (50 -> 1) is rank-1: keep it off the MXU (which would pad
    # 50->128 and 1->128). VPU elementwise mul + XLU lane reduce instead,
    # then the CORAL bias broadcast-add fused into the store:
    #   logits = (z @ w4 + b4) + coral_bias = sum(z * w4_row, -1) + (b4 + coral_bias)
    s = jnp.sum(z * w4_ref[...], axis=-1, keepdims=True)        # (tm, 1) f32
    out_ref[...] = (s + bc_ref[...]).astype(out_ref.dtype)      # (tm, K-1) via broadcast


def prepare_params(params):
    """One-time (per-weight-set) preprocessing; hoisted out of the forward path."""
    w1, b1, w2, b2, w3, b3, w4, b4, cb = params
    H3 = w3.shape[1]
    Km1 = cb.shape[-1]
    return (
        w1.astype(jnp.bfloat16), b1.reshape(1, -1).astype(jnp.float32),
        w2.astype(jnp.bfloat16), b2.reshape(1, -1).astype(jnp.float32),
        w3.astype(jnp.bfloat16), b3.reshape(1, -1).astype(jnp.float32),
        w4.reshape(1, H3).astype(jnp.float32),                        # rank-1 row for VPU/XLU
        (b4.reshape(1, 1) + cb.reshape(1, Km1)).astype(jnp.float32),  # fused b4 + coral_bias
    )


def dnn_ordinal_forward(x, prepared, *, tm=4096):
    """Returns CORAL logits of shape (N, num_classes - 1).

    `tm` is the batch tile (sweepable). Default 4096: ~12 MiB of VMEM
    temporaries, comfortably inside the 32-48 MiB scoped limit on v5e/v6e/v7x
    while amortizing the ~0.35us per-grid-step pipeline overhead.
    """
    w1b, b1f, w2b, b2f, w3b, b3f, w4r, bc = prepared
    N, C = x.shape
    H1, H2, H3 = w1b.shape[1], w2b.shape[1], w3b.shape[1]
    Km1 = bc.shape[1]

    # Batch tiling. Keep the grid >= 2 steps whenever possible so the
    # "parallel" axis shards across both TensorCores on v7x; on 1-TC chips the
    # extra grid step costs ~0.35us (negligible).
    tm_eff = max(8, min(tm, _round_up(N, 8)))
    if N > 8:
        tm_eff = min(tm_eff, _round_up(pl.cdiv(N, 2), 8))
    grid = (pl.cdiv(N, tm_eff),)   # ragged last block: Pallas masks the writeback

    def full_spec(shape):
        # Constant index_map: weights/biases stay resident in VMEM across steps.
        return pl.BlockSpec(shape, lambda i: (0, 0))

    mac = C * H1 + H1 * H2 + H2 * H3 + H3
    cost = pl.CostEstimate(
        flops=2 * N * mac,
        transcendentals=0,
        bytes_accessed=N * (C * 4 + Km1 * 4) + 2 * (C * H1 + H1 * H2 + H2 * H3)
        + 4 * (H1 + H2 + H3 + H3 + Km1),
    )

    logits = pl.pallas_call(
        dnn_ordinal_kernel,
        out_shape=jax.ShapeDtypeStruct((N, Km1), jnp.float32),
        grid_spec=pltpu.PrefetchScalarGridSpec(
            num_scalar_prefetch=0,
            grid=grid,
            in_specs=[
                pl.BlockSpec((tm_eff, C), lambda i: (i, 0)),  # x tile over batch (native f32)
                full_spec((C, H1)), full_spec((1, H1)),       # fclayer1 W, b
                full_spec((H1, H2)), full_spec((1, H2)),      # fclayer2 W, b
                full_spec((H2, H3)), full_spec((1, H3)),      # fclayer3 W, b
                full_spec((1, H3)),                           # fclayer4 weight row (rank-1)
                full_spec((1, Km1)),                          # fused bias (b4 + coral_bias)
            ],
            out_specs=pl.BlockSpec((tm_eff, Km1), lambda i: (i, 0)),
        ),
        compiler_params=pltpu.CompilerParams(
            dimension_semantics=("parallel",),
            vmem_limit_bytes=48 * 1024 * 1024,   # <= v7x 64 MiB physical; plenty for tm=4096
        ),
        cost_estimate=cost,
    )(x, w1b, b1f, w2b, b2f, w3b, b3f, w4r, bc)

    return logits


def init_params(key, in_channels, num_classes, hidden_dims=(200, 100, 50)):
    h1, h2, h3 = hidden_dims
    ks = jax.random.split(key, 8)
    scale = 0.05
    # Weights stored already transposed to (in, out).
    w1 = scale * jax.random.normal(ks[0], (in_channels, h1), jnp.float32)
    b1 = scale * jax.random.normal(ks[1], (1, h1), jnp.float32)
    w2 = scale * jax.random.normal(ks[2], (h1, h2), jnp.float32)
    b2 = scale * jax.random.normal(ks[3], (1, h2), jnp.float32)
    w3 = scale * jax.random.normal(ks[4], (h2, h3), jnp.float32)
    b3 = scale * jax.random.normal(ks[5], (1, h3), jnp.float32)
    w4 = scale * jax.random.normal(ks[6], (h3, 1), jnp.float32)
    b4 = scale * jax.random.normal(ks[7], (1, 1), jnp.float32)
    # coral_bias = arange(num_classes-1, 0, -1) / (num_classes-1)
    cb = (jnp.arange(num_classes - 1, 0, -1, dtype=jnp.float32)
          / float(num_classes - 1)).reshape(1, num_classes - 1)
    return (w1, b1, w2, b2, w3, b3, w4, b4, cb)


def reference_forward_f32(x, params):
    w1, b1, w2, b2, w3, b3, w4, b4, cb = params
    z = jnp.maximum(x @ w1 + b1, 0.0)
    z = jnp.maximum(z @ w2 + b2, 0.0)
    z = jnp.maximum(z @ w3 + b3, 0.0)
    z = z @ w4 + b4
    return z + cb


def reference_forward_mixed(x, params):
    """Mirrors the kernel's precision: bf16 MXU operands for the first three
    layers, f32 accumulation/ReLU, and an exact f32 rank-1 final layer."""
    w1, b1, w2, b2, w3, b3, w4, b4, cb = params
    bf = jnp.bfloat16

    def mm(a, w):
        return jnp.dot(a.astype(bf), w.astype(bf), preferred_element_type=jnp.float32)

    z = jnp.maximum(mm(x, w1) + b1, 0.0)
    z = jnp.maximum(mm(z, w2) + b2, 0.0)
    z = jnp.maximum(mm(z, w3) + b3, 0.0)
    z = jnp.sum(z * w4.reshape(1, -1), axis=-1, keepdims=True) + b4
    return z + cb


if __name__ == "__main__":
    key = jax.random.PRNGKey(0)
    kx, kp = jax.random.split(key)

    # Small shapes; N deliberately not a multiple of 8 to exercise the ragged last block.
    N, in_channels, num_classes = 61, 32, 7
    x = jax.random.normal(kx, (N, in_channels), jnp.float32)
    params = init_params(kp, in_channels, num_classes)
    prepared = prepare_params(params)   # one-time preprocessing, outside the forward path

    logits = dnn_ordinal_forward(x, prepared, tm=4096)
    logits = jax.block_until_ready(logits)

    assert logits.shape == (N, num_classes - 1)

    ref_mixed = reference_forward_mixed(x, params)
    assert jnp.allclose(logits, ref_mixed, atol=2e-3, rtol=2e-3), \
        "mismatch vs mixed-precision reference"

    ref_f32 = reference_forward_f32(x, params)
    assert jnp.allclose(logits, ref_f32, atol=5e-2, rtol=5e-2), \
        "mismatch vs f32 reference"

    # Module returns [logits, input]; `input` is passed through unchanged (glue).
    print("KERNEL_OK")
</pallas_src>

<mosaic_0001>
module attributes {stable_mosaic.version = 11 : i64} {
  func.func @dnn_ordinal_kernel(%arg0: i32, %arg1: memref<32x32xf32, #tpu.memory_space<vmem>>, %arg2: memref<32x200xbf16, #tpu.memory_space<vmem>>, %arg3: memref<1x200xf32, #tpu.memory_space<vmem>>, %arg4: memref<200x100xbf16, #tpu.memory_space<vmem>>, %arg5: memref<1x100xf32, #tpu.memory_space<vmem>>, %arg6: memref<100x50xbf16, #tpu.memory_space<vmem>>, %arg7: memref<1x50xf32, #tpu.memory_space<vmem>>, %arg8: memref<1x50xf32, #tpu.memory_space<vmem>>, %arg9: memref<1x6xf32, #tpu.memory_space<vmem>>, %arg10: memref<32x6xf32, #tpu.memory_space<vmem>>) attributes {dimension_semantics = [#tpu.dimension_semantics<parallel>], iteration_bounds = array<i64: 2>, scalar_prefetch = 0 : i64, scratch_operands = 0 : i64, tpu.core_type = #tpu.core_type<tc>, window_params = [{transform_indices = @transform_0, window_bounds = array<i64: 32, 32>}, {pipeline_mode = #tpu.pipeline_mode<synchronous>, transform_indices = @transform_1, window_bounds = array<i64: 32, 200>}, {pipeline_mode = #tpu.pipeline_mode<synchronous>, transform_indices = @transform_2, window_bounds = array<i64: 1, 200>}, {pipeline_mode = #tpu.pipeline_mode<synchronous>, transform_indices = @transform_3, window_bounds = array<i64: 200, 100>}, {pipeline_mode = #tpu.pipeline_mode<synchronous>, transform_indices = @transform_4, window_bounds = array<i64: 1, 100>}, {pipeline_mode = #tpu.pipeline_mode<synchronous>, transform_indices = @transform_5, window_bounds = array<i64: 100, 50>}, {pipeline_mode = #tpu.pipeline_mode<synchronous>, transform_indices = @transform_6, window_bounds = array<i64: 1, 50>}, {pipeline_mode = #tpu.pipeline_mode<synchronous>, transform_indices = @transform_7, window_bounds = array<i64: 1, 50>}, {pipeline_mode = #tpu.pipeline_mode<synchronous>, transform_indices = @transform_8, window_bounds = array<i64: 1, 6>}, {transform_indices = @transform_9, window_bounds = array<i64: 32, 6>}]} {
    %c0 = arith.constant 0 : index
    %c0_0 = arith.constant 0 : index
    %0 = vector.load %arg1[%c0, %c0_0] : memref<32x32xf32, #tpu.memory_space<vmem>>, vector<32x32xf32>
    %1 = arith.truncf %0 : vector<32x32xf32> to vector<32x32xbf16>
    %c0_1 = arith.constant 0 : index
    %c0_2 = arith.constant 0 : index
    %2 = vector.load %arg2[%c0_1, %c0_2] : memref<32x200xbf16, #tpu.memory_space<vmem>>, vector<32x200xbf16>
    %cst = arith.constant dense<0.000000e+00> : vector<32x200xf32>
    %3 = tpu.matmul %1, %2, %cst {dimension_numbers = #tpu.dot_dimension_numbers<[1], [0], [0], [1], [0, 0, 1, 1], [], []>} : vector<32x32xbf16>, vector<32x200xbf16>, vector<32x200xf32> -> vector<32x200xf32>
    %c0_3 = arith.constant 0 : index
    %c0_4 = arith.constant 0 : index
    %4 = vector.load %arg3[%c0_3, %c0_4] : memref<1x200xf32, #tpu.memory_space<vmem>>, vector<1x200xf32>
    %5 = vector.broadcast %4 : vector<1x200xf32> to vector<32x200xf32>
    %6 = arith.addf %3, %5 : vector<32x200xf32>
    %cst_5 = arith.constant 0.000000e+00 : f32
    %7 = vector.broadcast %cst_5 : f32 to vector<32x200xf32>
    %8 = arith.maximumf %6, %7 : vector<32x200xf32>
    %9 = arith.truncf %8 : vector<32x200xf32> to vector<32x200xbf16>
    %c0_6 = arith.constant 0 : index
    %c0_7 = arith.constant 0 : index
    %10 = vector.load %arg4[%c0_6, %c0_7] : memref<200x100xbf16, #tpu.memory_space<vmem>>, vector<200x100xbf16>
    %cst_8 = arith.constant dense<0.000000e+00> : vector<32x100xf32>
    %11 = tpu.matmul %9, %10, %cst_8 {dimension_numbers = #tpu.dot_dimension_numbers<[1], [0], [0], [1], [0, 0, 1, 1], [], []>} : vector<32x200xbf16>, vector<200x100xbf16>, vector<32x100xf32> -> vector<32x100xf32>
    %c0_9 = arith.constant 0 : index
    %c0_10 = arith.constant 0 : index
    %12 = vector.load %arg5[%c0_9, %c0_10] : memref<1x100xf32, #tpu.memory_space<vmem>>, vector<1x100xf32>
    %13 = vector.broadcast %12 : vector<1x100xf32> to vector<32x100xf32>
    %14 = arith.addf %11, %13 : vector<32x100xf32>
    %cst_11 = arith.constant 0.000000e+00 : f32
    %15 = vector.broadcast %cst_11 : f32 to vector<32x100xf32>
    %16 = arith.maximumf %14, %15 : vector<32x100xf32>
    %17 = arith.truncf %16 : vector<32x100xf32> to vector<32x100xbf16>
    %c0_12 = arith.constant 0 : index
    %c0_13 = arith.constant 0 : index
    %18 = vector.load %arg6[%c0_12, %c0_13] : memref<100x50xbf16, #tpu.memory_space<vmem>>, vector<100x50xbf16>
    %cst_14 = arith.constant dense<0.000000e+00> : vector<32x50xf32>
    %19 = tpu.matmul %17, %18, %cst_14 {dimension_numbers = #tpu.dot_dimension_numbers<[1], [0], [0], [1], [0, 0, 1, 1], [], []>} : vector<32x100xbf16>, vector<100x50xbf16>, vector<32x50xf32> -> vector<32x50xf32>
    %c0_15 = arith.constant 0 : index
    %c0_16 = arith.constant 0 : index
    %20 = vector.load %arg7[%c0_15, %c0_16] : memref<1x50xf32, #tpu.memory_space<vmem>>, vector<1x50xf32>
    %21 = vector.broadcast %20 : vector<1x50xf32> to vector<32x50xf32>
    %22 = arith.addf %19, %21 : vector<32x50xf32>
    %cst_17 = arith.constant 0.000000e+00 : f32
    %23 = vector.broadcast %cst_17 : f32 to vector<32x50xf32>
    %24 = arith.maximumf %22, %23 : vector<32x50xf32>
    %c0_18 = arith.constant 0 : index
    %c0_19 = arith.constant 0 : index
    %25 = vector.load %arg8[%c0_18, %c0_19] : memref<1x50xf32, #tpu.memory_space<vmem>>, vector<1x50xf32>
    %26 = vector.broadcast %25 : vector<1x50xf32> to vector<32x50xf32>
    %27 = arith.mulf %24, %26 : vector<32x50xf32>
    %cst_20 = arith.constant dense<0.000000e+00> : vector<32xf32>
    %28 = vector.multi_reduction <add>, %27, %cst_20 [1] : vector<32x50xf32> to vector<32xf32>
    %29 = vector.shape_cast %28 : vector<32xf32> to vector<32x1xf32>
    %c0_21 = arith.constant 0 : index
    %c0_22 = arith.constant 0 : index
    %30 = vector.load %arg9[%c0_21, %c0_22] : memref<1x6xf32, #tpu.memory_space<vmem>>, vector<1x6xf32>
    %31 = vector.broadcast %29 : vector<32x1xf32> to vector<32x6xf32>
    %32 = vector.broadcast %30 : vector<1x6xf32> to vector<32x6xf32>
    %33 = arith.addf %31, %32 : vector<32x6xf32>
    %c0_23 = arith.constant 0 : index
    %c0_24 = arith.constant 0 : index
    %34 = vector.load %arg10[%c0_23, %c0_24] : memref<32x6xf32, #tpu.memory_space<vmem>>, vector<32x6xf32>
    tpu.vector_store %arg10[%c0_23, %c0_24], %33 {strides = array<i32>} : memref<32x6xf32, #tpu.memory_space<vmem>>, vector<32x6xf32>,
    return
  }
  func.func @transform_0(%arg0: i32) -> (i32, i32) {
    %c0_i32 = arith.constant 0 : i32
    %c0_i32_0 = arith.constant 0 : i32
    return %arg0, %c0_i32 : i32, i32
  }
  func.func @transform_1(%arg0: i32) -> (i32, i32) {
    %c0_i32 = arith.constant 0 : i32
    %c0_i32_0 = arith.constant 0 : i32
    %c0_i32_1 = arith.constant 0 : i32
    return %c0_i32, %c0_i32_0 : i32, i32
  }
  func.func @transform_2(%arg0: i32) -> (i32, i32) {
    %c0_i32 = arith.constant 0 : i32
    %c0_i32_0 = arith.constant 0 : i32
    %c0_i32_1 = arith.constant 0 : i32
    return %c0_i32, %c0_i32_0 : i32, i32
  }
  func.func @transform_3(%arg0: i32) -> (i32, i32) {
    %c0_i32 = arith.constant 0 : i32
    %c0_i32_0 = arith.constant 0 : i32
    %c0_i32_1 = arith.constant 0 : i32
    return %c0_i32, %c0_i32_0 : i32, i32
  }
  func.func @transform_4(%arg0: i32) -> (i32, i32) {
    %c0_i32 = arith.constant 0 : i32
    %c0_i32_0 = arith.constant 0 : i32
    %c0_i32_1 = arith.constant 0 : i32
    return %c0_i32, %c0_i32_0 : i32, i32
  }
  func.func @transform_5(%arg0: i32) -> (i32, i32) {
    %c0_i32 = arith.constant 0 : i32
    %c0_i32_0 = arith.constant 0 : i32
    %c0_i32_1 = arith.constant 0 : i32
    return %c0_i32, %c0_i32_0 : i32, i32
  }
  func.func @transform_6(%arg0: i32) -> (i32, i32) {
    %c0_i32 = arith.constant 0 : i32
    %c0_i32_0 = arith.constant 0 : i32
    %c0_i32_1 = arith.constant 0 : i32
    return %c0_i32, %c0_i32_0 : i32, i32
  }
  func.func @transform_7(%arg0: i32) -> (i32, i32) {
    %c0_i32 = arith.constant 0 : i32
    %c0_i32_0 = arith.constant 0 : i32
    %c0_i32_1 = arith.constant 0 : i32
    return %c0_i32, %c0_i32_0 : i32, i32
  }
  func.func @transform_8(%arg0: i32) -> (i32, i32) {
    %c0_i32 = arith.constant 0 : i32
    %c0_i32_0 = arith.constant 0 : i32
    %c0_i32_1 = arith.constant 0 : i32
    return %c0_i32, %c0_i32_0 : i32, i32
  }
  func.func @transform_9(%arg0: i32) -> (i32, i32) {
    %c0_i32 = arith.constant 0 : i32
    %c0_i32_0 = arith.constant 0 : i32
    return %arg0, %c0_i32 : i32, i32
  }
}

</mosaic_0001>

<llo_original>
// kernel: tpu_custom_call.1
$region0: #{tpu_custom_call.1}
  #allocation0 [shape = 'u32[]', space=smem, size = 0x4, offset = 0x4, fixed_abs, tag = 'smem constant byte address 0x4 - core index']
  #allocation1 [shape = 'u32[144,128]{1,0:T(1,128)}', space=vmem, size = 0x12000, scoped, tag = 'internal scratch']
  %s0 = inlined_call_operand.vmem [shape: f32[61,32], index: 0, kind: input, shape index: {}]
  %s1 = inlined_call_operand.vmem [shape: bf16[32,200], index: 1, kind: input, shape index: {}]
  %s2 = inlined_call_operand.vmem [shape: f32[1,200], index: 2, kind: input, shape index: {}]
  %s3 = inlined_call_operand.vmem [shape: bf16[200,100], index: 3, kind: input, shape index: {}]
  %s4 = inlined_call_operand.vmem [shape: f32[1,100], index: 4, kind: input, shape index: {}]
  %s5 = inlined_call_operand.vmem [shape: bf16[100,50], index: 5, kind: input, shape index: {}]
  %s6 = inlined_call_operand.vmem [shape: f32[1,50], index: 6, kind: input, shape index: {}]
  %s7 = inlined_call_operand.vmem [shape: f32[1,50], index: 7, kind: input, shape index: {}]
  %s8 = inlined_call_operand.vmem [shape: f32[1,6], index: 8, kind: input, shape index: {}]
  %s9 = inlined_call_operand.vmem [shape: f32[61,6], index: 9, kind: output, shape index: {}]
  %s10 = sld [smem:[#allocation0]]
  $region69: #{tpu_custom_call.1} parent=0
    _
  %s12 = ssub.s32 1, %s10
  %s13 = scalar_select 0, %s12, %s10
  loop: start=0, step=1, limit=4
  $region2: #{tpu_custom_call.1} parent=0 // loop_pre_header
    _
  $region3: #{tpu_custom_call.1} parent=0 // loop_header
    %s15 = sphi 0, %s19
    %p16 = scmp.ge.s32.totalorder %s15, 4
    %s25 = sphi 0, %s27
    %s28 = sphi 0, %s25
    %s29 = sphi 0, %s28
    %s45 = sphi 0, %s29
    %s49 = sphi 0, %s49
    %s51 = sphi 0, %s49
    %s52 = sphi 0, %s51
    %s66 = sphi 0, %s52
    %s70 = sphi 0, %s70
    %s72 = sphi 0, %s70
    %s73 = sphi 0, %s72
    %s87 = sphi 0, %s73
    %s91 = sphi 0, %s91
    %s93 = sphi 0, %s91
    %s94 = sphi 0, %s93
    %s108 = sphi 0, %s94
    %s112 = sphi 0, %s112
    %s114 = sphi 0, %s112
    %s115 = sphi 0, %s114
    %s129 = sphi 0, %s115
    %s133 = sphi 0, %s133
    %s135 = sphi 0, %s133
    %s136 = sphi 0, %s135
    %s150 = sphi 0, %s136
    %s154 = sphi 0, %s154
    %s156 = sphi 0, %s154
    %s157 = sphi 0, %s156
    %s171 = sphi 0, %s157
    %s175 = sphi 0, %s175
    %s177 = sphi 0, %s175
    %s178 = sphi 0, %s177
    %s192 = sphi 0, %s178
    %s196 = sphi 0, %s196
    %s198 = sphi 0, %s196
    %s199 = sphi 0, %s198
    %s213 = sphi 0, %s199
    %s219 = sphi 0, %s221
    %s222 = sphi 0, %s219
    %s223 = sphi 0, %s222
    %s239 = sphi 0, %s223
  $region4: #{tpu_custom_call.1} parent=0 // loop_header_branch
    %18 = sbr.rel (%p16) target = $region8
  $region5: #{tpu_custom_call.1} parent=0 // loop_body
    %s20 = ssub.s32 %s15, 1
    %s21 = ssub.s32 %s15, 2
    %s22 = sadd.s32 %s15, 1
    %s23 = ssub.s32 %s15, %s22
    %p24 = scmp.eq.s32.totalorder %s23, 0
    %s26 = sadd.s32 %s25, 1
    %s27 = scalar_select %p24, %s25, %s26
    %p30 = pneg %p24
    %p31 = scmp.eq.s32.totalorder %s15, 1
    %p32 = por %p30, %p31
    %p33 = scmp.ne.s32.totalorder %s25, %s28
    %p34 = scmp.eq.s32.totalorder %s15, 0
    %p35 = por %p33, %p34
    %p36 = scmp.ne.s32.totalorder %s25, %s28
    %p37 = scmp.eq.s32.totalorder %s20, 1
    %p38 = por %p36, %p37
    %p39 = scmp.ne.s32.totalorder %s28, %s29
    %p40 = scmp.eq.s32.totalorder %s20, 0
    %p41 = por %p39, %p40
    %p42 = scmp.ne.s32.totalorder %s28, %s29
    %p43 = scmp.eq.s32.totalorder %s21, 1
    %p44 = por %p42, %p43
    %p46 = scmp.ne.s32.totalorder %s29, %s45
    %p47 = scmp.eq.s32.totalorder %s21, 0
    %p48 = por %p46, %p47
    %s50 = sadd.s32 %s49, 1
    %p53 = scmp.eq.s32.totalorder %s15, 1
    %p54 = scmp.ne.s32.totalorder %s49, %s51
    %p55 = scmp.eq.s32.totalorder %s15, 0
    %p56 = por %p54, %p55
    %p57 = scmp.ne.s32.totalorder %s49, %s51
    %p58 = scmp.eq.s32.totalorder %s20, 1
    %p59 = por %p57, %p58
    %p60 = scmp.ne.s32.totalorder %s51, %s52
    %p61 = scmp.eq.s32.totalorder %s20, 0
    %p62 = por %p60, %p61
    %p63 = scmp.ne.s32.totalorder %s51, %s52
    %p64 = scmp.eq.s32.totalorder %s21, 1
    %p65 = por %p63, %p64
    %p67 = scmp.ne.s32.totalorder %s52, %s66
    %p68 = scmp.eq.s32.totalorder %s21, 0
    %p69 = por %p67, %p68
    %s71 = sadd.s32 %s70, 1
    %p74 = scmp.eq.s32.totalorder %s15, 1
    %p75 = scmp.ne.s32.totalorder %s70, %s72
    %p76 = scmp.eq.s32.totalorder %s15, 0
    %p77 = por %p75, %p76
    %p78 = scmp.ne.s32.totalorder %s70, %s72
    %p79 = scmp.eq.s32.totalorder %s20, 1
    %p80 = por %p78, %p79
    %p81 = scmp.ne.s32.totalorder %s72, %s73
    %p82 = scmp.eq.s32.totalorder %s20, 0
    %p83 = por %p81, %p82
    %p84 = scmp.ne.s32.totalorder %s72, %s73
    %p85 = scmp.eq.s32.totalorder %s21, 1
    %p86 = por %p84, %p85
    %p88 = scmp.ne.s32.totalorder %s73, %s87
    %p89 = scmp.eq.s32.totalorder %s21, 0
    %p90 = por %p88, %p89
    %s92 = sadd.s32 %s91, 1
    %p95 = scmp.eq.s32.totalorder %s15, 1
    %p96 = scmp.ne.s32.totalorder %s91, %s93
    %p97 = scmp.eq.s32.totalorder %s15, 0
    %p98 = por %p96, %p97
    %p99 = scmp.ne.s32.totalorder %s91, %s93
    %p100 = scmp.eq.s32.totalorder %s20, 1
    %p101 = por %p99, %p100
    %p102 = scmp.ne.s32.totalorder %s93, %s94
    %p103 = scmp.eq.s32.totalorder %s20, 0
    %p104 = por %p102, %p103
    %p105 = scmp.ne.s32.totalorder %s93, %s94
    %p106 = scmp.eq.s32.totalorder %s21, 1
    %p107 = por %p105, %p106
    %p109 = scmp.ne.s32.totalorder %s94, %s108
    %p110 = scmp.eq.s32.totalorder %s21, 0
    %p111 = por %p109, %p110
    %s113 = sadd.s32 %s112, 1
    %p116 = scmp.eq.s32.totalorder %s15, 1
    %p117 = scmp.ne.s32.totalorder %s112, %s114
    %p118 = scmp.eq.s32.totalorder %s15, 0
    %p119 = por %p117, %p118
    %p120 = scmp.ne.s32.totalorder %s112, %s114
    %p121 = scmp.eq.s32.totalorder %s20, 1
    %p122 = por %p120, %p121
    %p123 = scmp.ne.s32.totalorder %s114, %s115
    %p124 = scmp.eq.s32.totalorder %s20, 0
    %p125 = por %p123, %p124
    %p126 = scmp.ne.s32.totalorder %s114, %s115
    %p127 = scmp.eq.s32.totalorder %s21, 1
    %p128 = por %p126, %p127
    %p130 = scmp.ne.s32.totalorder %s115, %s129
    %p131 = scmp.eq.s32.totalorder %s21, 0
    %p132 = por %p130, %p131
    %s134 = sadd.s32 %s133, 1
    %p137 = scmp.eq.s32.totalorder %s15, 1
    %p138 = scmp.ne.s32.totalorder %s133, %s135
    %p139 = scmp.eq.s32.totalorder %s15, 0
    %p140 = por %p138, %p139
    %p141 = scmp.ne.s32.totalorder %s133, %s135
    %p142 = scmp.eq.s32.totalorder %s20, 1
    %p143 = por %p141, %p142
    %p144 = scmp.ne.s32.totalorder %s135, %s136
    %p145 = scmp.eq.s32.totalorder %s20, 0
    %p146 = por %p144, %p145
    %p147 = scmp.ne.s32.totalorder %s135, %s136
    %p148 = scmp.eq.s32.totalorder %s21, 1
    %p149 = por %p147, %p148
    %p151 = scmp.ne.s32.totalorder %s136, %s150
    %p152 = scmp.eq.s32.totalorder %s21, 0
    %p153 = por %p151, %p152
    %s155 = sadd.s32 %s154, 1
    %p158 = scmp.eq.s32.totalorder %s15, 1
    %p159 = scmp.ne.s32.totalorder %s154, %s156
    %p160 = scmp.eq.s32.totalorder %s15, 0
    %p161 = por %p159, %p160
    %p162 = scmp.ne.s32.totalorder %s154, %s156
    %p163 = scmp.eq.s32.totalorder %s20, 1
    %p164 = por %p162, %p163
    %p165 = scmp.ne.s32.totalorder %s156, %s157
    %p166 = scmp.eq.s32.totalorder %s20, 0
    %p167 = por %p165, %p166
    %p168 = scmp.ne.s32.totalorder %s156, %s157
    %p169 = scmp.eq.s32.totalorder %s21, 1
    %p170 = por %p168, %p169
    %p172 = scmp.ne.s32.totalorder %s157, %s171
    %p173 = scmp.eq.s32.totalorder %s21, 0
    %p174 = por %p172, %p173
    %s176 = sadd.s32 %s175, 1
    %p179 = scmp.eq.s32.totalorder %s15, 1
    %p180 = scmp.ne.s32.totalorder %s175, %s177
    %p181 = scmp.eq.s32.totalorder %s15, 0
    %p182 = por %p180, %p181
    %p183 = scmp.ne.s32.totalorder %s175, %s177
    %p184 = scmp.eq.s32.totalorder %s20, 1
    %p185 = por %p183, %p184
    %p186 = scmp.ne.s32.totalorder %s177, %s178
    %p187 = scmp.eq.s32.totalorder %s20, 0
    %p188 = por %p186, %p187
    %p189 = scmp.ne.s32.totalorder %s177, %s178
    %p190 = scmp.eq.s32.totalorder %s21, 1
    %p191 = por %p189, %p190
    %p193 = scmp.ne.s32.totalorder %s178, %s192
    %p194 = scmp.eq.s32.totalorder %s21, 0
    %p195 = por %p193, %p194
    %s197 = sadd.s32 %s196, 1
    %p200 = scmp.eq.s32.totalorder %s15, 1
    %p201 = scmp.ne.s32.totalorder %s196, %s198
    %p202 = scmp.eq.s32.totalorder %s15, 0
    %p203 = por %p201, %p202
    %p204 = scmp.ne.s32.totalorder %s196, %s198
    %p205 = scmp.eq.s32.totalorder %s20, 1
    %p206 = por %p204, %p205
    %p207 = scmp.ne.s32.totalorder %s198, %s199
    %p208 = scmp.eq.s32.totalorder %s20, 0
    %p209 = por %p207, %p208
    %p210 = scmp.ne.s32.totalorder %s198, %s199
    %p211 = scmp.eq.s32.totalorder %s21, 1
    %p212 = por %p210, %p211
    %p214 = scmp.ne.s32.totalorder %s199, %s213
    %p215 = scmp.eq.s32.totalorder %s21, 0
    %p216 = por %p214, %p215
    %s217 = ssub.s32 %s15, %s22
    %p218 = scmp.eq.s32.totalorder %s217, 0
    %s220 = sadd.s32 %s219, 1
    %s221 = scalar_select %p218, %s219, %s220
    %p224 = pneg %p218
    %p225 = scmp.eq.s32.totalorder %s15, 1
    %p226 = por %p224, %p225
    %p227 = scmp.ne.s32.totalorder %s219, %s222
    %p228 = scmp.eq.s32.totalorder %s15, 0
    %p229 = por %p227, %p228
    %p230 = scmp.ne.s32.totalorder %s219, %s222
    %p231 = scmp.eq.s32.totalorder %s20, 1
    %p232 = por %p230, %p231
    %p233 = scmp.ne.s32.totalorder %s222, %s223
    %p234 = scmp.eq.s32.totalorder %s20, 0
    %p235 = por %p233, %p234
    %p236 = scmp.ne.s32.totalorder %s222, %s223
    %p237 = scmp.eq.s32.totalorder %s21, 1
    %p238 = por %p236, %p237
    %p240 = scmp.ne.s32.totalorder %s223, %s239
    %p241 = scmp.eq.s32.totalorder %s21, 0
    %p242 = por %p240, %p241
    %p243 = scmp.le.s32.totalorder 1, %s15
    %p244 = scmp.lt.s32.totalorder %s15, 3
    %p245 = pnand %p243, %p244
    %p246 = pneg %p245
    // Predicated region
    $region9: #{tpu_custom_call.1} parent=5 // pred_check
      _
    $region10: #{tpu_custom_call.1} parent=5 // pred_check_branch
      %248 = sbr.rel (%p245) target = $region12
    $region11: #{tpu_custom_call.1} parent=5 // pred_region
      %s249 = ssub.s32 %s15, 1
      // Predicated region
      $region13: #{tpu_custom_call.1} parent=11 // pred_check
        %p250 = pneg %p62
      $region14: #{tpu_custom_call.1} parent=11 // pred_check_branch
        %252 = sbr.rel (%p250) target = $region16
      $region15: #{tpu_custom_call.1} parent=11 // pred_region
        _
      $region16: #{tpu_custom_call.1} parent=11 // pred_fallthru
        _
      // Predicated region
      $region17: #{tpu_custom_call.1} parent=11 // pred_check
        %p253 = pneg %p83
      $region18: #{tpu_custom_call.1} parent=11 // pred_check_branch
        %255 = sbr.rel (%p253) target = $region20
      $region19: #{tpu_custom_call.1} parent=11 // pred_region
        _
      $region20: #{tpu_custom_call.1} parent=11 // pred_fallthru
        _
      // Predicated region
      $region21: #{tpu_custom_call.1} parent=11 // pred_check
        %p256 = pneg %p104
      $region22: #{tpu_custom_call.1} parent=11 // pred_check_branch
        %258 = sbr.rel (%p256) target = $region24
      $region23: #{tpu_custom_call.1} parent=11 // pred_region
        _
      $region24: #{tpu_custom_call.1} parent=11 // pred_fallthru
        _
      // Predicated region
      $region25: #{tpu_custom_call.1} parent=11 // pred_check
        %p259 = pneg %p125
      $region26: #{tpu_custom_call.1} parent=11 // pred_check_branch
        %261 = sbr.rel (%p259) target = $region28
      $region27: #{tpu_custom_call.1} parent=11 // pred_region
        _
      $region28: #{tpu_custom_call.1} parent=11 // pred_fallthru
        _
      // Predicated region
      $region29: #{tpu_custom_call.1} parent=11 // pred_check
        %p262 = pneg %p146
      $region30: #{tpu_custom_call.1} parent=11 // pred_check_branch
        %264 = sbr.rel (%p262) target = $region32
      $region31: #{tpu_custom_call.1} parent=11 // pred_region
        _
      $region32: #{tpu_custom_call.1} parent=11 // pred_fallthru
        _
      // Predicated region
      $region33: #{tpu_custom_call.1} parent=11 // pred_check
        %p265 = pneg %p167
      $region34: #{tpu_custom_call.1} parent=11 // pred_check_branch
        %267 = sbr.rel (%p265) target = $region36
      $region35: #{tpu_custom_call.1} parent=11 // pred_region
        _
      $region36: #{tpu_custom_call.1} parent=11 // pred_fallthru
        _
      // Predicated region
      $region37: #{tpu_custom_call.1} parent=11 // pred_check
        %p268 = pneg %p188
      $region38: #{tpu_custom_call.1} parent=11 // pred_check_branch
        %270 = sbr.rel (%p268) target = $region40
      $region39: #{tpu_custom_call.1} parent=11 // pred_region
        _
      $region40: #{tpu_custom_call.1} parent=11 // pred_fallthru
        _
      // Predicated region
      $region41: #{tpu_custom_call.1} parent=11 // pred_check
        %p271 = pneg %p209
      $region42: #{tpu_custom_call.1} parent=11 // pred_check_branch
        %273 = sbr.rel (%p271) target = $region44
      $region43: #{tpu_custom_call.1} parent=11 // pred_region
        _
      $region44: #{tpu_custom_call.1} parent=11 // pred_fallthru
        _
    $region12: #{tpu_custom_call.1} parent=5 // pred_fallthru
      _
    %p274 = scmp.lt.s32.totalorder %s15, 2
    // Predicated region
    $region45: #{tpu_custom_call.1} parent=5 // pred_check
      %p275 = pneg %p274
    $region46: #{tpu_custom_call.1} parent=5 // pred_check_branch
      %277 = sbr.rel (%p275) target = $region48
    $region47: #{tpu_custom_call.1} parent=5 // pred_region
      // Predicated region
      $region49: #{tpu_custom_call.1} parent=47 // pred_check
        %p278 = pneg %p35
      $region50: #{tpu_custom_call.1} parent=47 // pred_check_branch
        %280 = sbr.rel (%p278) target = $region52
      $region51: #{tpu_custom_call.1} parent=47 // pred_region
        %s281 = smul.u32 4, %s15
        %p282 = scmp.lt.s32.totalorder %s281, 7
        %s283 = scalar_select %p282, %s281, 7
        %s284 = smul.addr %s283, 8
        %s285 = scalar_lea.vmem %s0, %s284
        %s286 = smul.u32 4, %s15
      $region52: #{tpu_custom_call.1} parent=47 // pred_fallthru
        _
    $region48: #{tpu_custom_call.1} parent=5 // pred_fallthru
      _
    %p287 = scmp.le.s32.totalorder 1, %s15
    %p288 = scmp.lt.s32.totalorder %s15, 3
    %p289 = pnand %p287, %p288
    %p290 = pneg %p289
    // Predicated region
    $region53: #{tpu_custom_call.1} parent=5 // pred_check
      _
    $region54: #{tpu_custom_call.1} parent=5 // pred_check_branch
      %292 = sbr.rel (%p289) target = $region56
    $region55: #{tpu_custom_call.1} parent=5 // pred_region
      %s293 = ssub.s32 %s15, 1
      %s294 = smul.u32 4, %s20
      %p295 = scmp.lt.s32.totalorder %s294, 7
      %s296 = scalar_select %p295, %s294, 7
      %s297 = smul.addr %s296, 8
      %s298 = scalar_lea.vmem %s0, %s297
      %p299 = pneg %p41
      %p300 = pneg %p38
      %p301 = pneg %p62
      %p302 = pneg %p59
      %p303 = pneg %p83
      %p304 = pneg %p80
      %p305 = pneg %p104
      %p306 = pneg %p101
      %p307 = pneg %p125
      %p308 = pneg %p122
      %p309 = pneg %p146
      %p310 = pneg %p143
      %p311 = pneg %p167
      %p312 = pneg %p164
      %p313 = pneg %p188
      %p314 = pneg %p185
      %p315 = pneg %p209
      %p316 = pneg %p206
      %p317 = pneg %p235
      %p318 = pneg %p232
      %s319 = smul.u32 4, %s20
      %p320 = scmp.lt.s32.totalorder %s319, 7
      %s321 = scalar_select %p320, %s319, 7
      %s322 = smul.addr %s321, 8
      %s323 = scalar_lea.vmem %s9, %s322
      %s324 = smul.u32 4, %s20
      %p325 = scmp.lt.s32.totalorder %s324, 7
      %s326 = scalar_select %p325, %s324, 7
      %s327 = smul.addr %s326, 8
      %s328 = scalar_lea.vmem %s0, %s327
      %s329 = smul.u32 4, %s20
      %s330 = smul.u32 4, %s20
      %p331 = scmp.lt.s32.totalorder %s330, 7
      %s332 = scalar_select %p331, %s330, 7
      %s333 = smul.addr %s332, 8
      %s334 = scalar_lea.vmem %s9, %s333
      %s335 = smul.u32 4, %s20
      %v337 = vld [vmem:[%s328] sm:$0xff]
      %v338 = vld [vmem:[%s328 + $0x8] sm:$0xff]
      %v339 = vld [vmem:[%s328 + $0x10] sm:$0xff]
      %v340 = vld [vmem:[%s328 + $0x18] sm:$0xff]
      %v341 = vpack.c.bf16 %v338, %v337
      %v342 = vpack.c.bf16 %v340, %v339
      %v343 = vld [vmem:[%s1] sm:$0xff]
      %v344 = vld [vmem:[%s1 + $0x8] sm:$0xff]
      %v345 = vld [vmem:[%s1 + $0x10] sm:$0xff]
      %v346 = vld [vmem:[%s1 + $0x18] sm:$0xff]
      %v347 = vld [vmem:[%s2] sm:$0x3]
      %v349 = vlaneseq
      %v350 = vshrl.u32 %v349, 7
      %v351 = vsub.s32 0, %v350
      %v352 = vrot.slane %v347, %v351
      %v353 = vlaneseq
      %v354 = vshrl.u32 %v353, 7
      %v355 = vsub.s32 1, %v354
      %v356 = vrot.slane %v347, %v355
      %v363 = vunpack.c.l.b16 %v343
      %v364 = vunpack.c.h.b16 %v343
      %v365 = vunpack.c.l.b16 %v344
      %v366 = vunpack.c.h.b16 %v344
      %v367 = vunpack.c.l.b16 %v345
      %v368 = vunpack.c.h.b16 %v345
      %v369 = vunpack.c.l.b16 %v346
      %v370 = vunpack.c.h.b16 %v346
      %v371 = vpack.c.b16 %v365, %v363
      %v372 = vpack.c.b16 %v366, %v364
      %v373 = vpack.c.b16 %v369, %v367
      %v374 = vpack.c.b16 %v370, %v368
      %vm379 = vcmask 261120
      %v381 = vsel %vm379, %v341, 0
      %v384 = vsel %vm379, %v342, 0
      %386 = vmatprep.subr.bf16.mxu0 0
      %387 = vmatpush1.bf16.msra.mxu0 0
      %388 = vmatprep.subr.bf16.mxu0 0
      %389 = vmatpush1.bf16.msra.mxu0 0
      %390 = vmatprep.subr.bf16.mxu0 0
      %391 = vmatpush1.bf16.msra.mxu0 0
      %392 = vmatprep.subr.bf16.mxu0 0
      %393 = vmatpush1.bf16.msra.mxu0 0
      %394 = vmatprep.subr.bf16.mxu0 0
      %395 = vmatpush1.bf16.msra.mxu0 0
      %396 = vmatprep.subr.bf16.mxu0 0
      %397 = vmatpush1.bf16.msra.mxu0 0
      %398 = vmatprep.subr.bf16.mxu0 %v374
      %399 = vmatpush1.bf16.msra.mxu0 %v373
      %400 = vmatprep.subr.bf16.mxu0 %v372
      %401 = vmatpush1.bf16.msra.mxu0 %v371
      %402 = vmatprep.subr.bf16.mxu0 0
      %403 = vmatpush2.bf16.msra.mxu0 0
      %404 = vmatprep.subr.bf16.mxu0 0
      %405 = vmatpush2.bf16.msra.mxu0 0
      %406 = vmatprep.subr.bf16.mxu0 0
      %407 = vmatpush2.bf16.msra.mxu0 0
      %408 = vmatprep.subr.bf16.mxu0 0
      %409 = vmatpush2.bf16.msra.mxu0 0
      %410 = vmatprep.subr.bf16.mxu0 0
      %411 = vmatpush2.bf16.msra.mxu0 0
      %412 = vmatprep.subr.bf16.mxu0 0
      %413 = vmatpush2.bf16.msra.mxu0 0
      %414 = vmatprep.subr.bf16.mxu0 0
      %415 = vmatpush2.bf16.msra.mxu0 0
      %416 = vmatprep.subr.bf16.mxu0 0
      %417 = vmatpush2.bf16.msra.mxu0 0
      %418 = vmatprep.mubr.bf16.mxu0 0
      %419 = vmatmul.mubr.bf16.gmra.mxu0 %v381
      %v420 = vpop.f32.mrf.mxu0
      %v421 = vadd.f32 %v352, %v420
      %v422 = vpop.f32.mrf.mxu0
      %v423 = vadd.f32 %v356, %v422
      %v424 = vpop.f32.mrf.mxu0
      %v425 = vadd.f32 %v352, %v424
      %v426 = vpop.f32.mrf.mxu0
      %v427 = vadd.f32 %v356, %v426
      %428 = vmatprep.mubr.bf16.mxu0 0
      %429 = vmatmul.mubr.bf16.gmra.mxu0 %v384
      %v430 = vpop.f32.mrf.mxu0
      %v431 = vadd.f32 %v352, %v430
      %v432 = vpop.f32.mrf.mxu0
      %v433 = vadd.f32 %v356, %v432
      %v434 = vpop.f32.mrf.mxu0
      %v435 = vadd.f32 %v352, %v434
      %v436 = vpop.f32.mrf.mxu0
      %v437 = vadd.f32 %v356, %v436
      %438 = vdwg.mxu0
      %v439 = vmax.f32 %v421, 0.0
      %v440 = vmax.f32 %v423, 0.0
      %v441 = vmax.f32 %v425, 0.0
      %v442 = vmax.f32 %v427, 0.0
      %v443 = vmax.f32 %v431, 0.0
      %v444 = vmax.f32 %v433, 0.0
      %v445 = vmax.f32 %v435, 0.0
      %v446 = vmax.f32 %v437, 0.0
      %v447 = vpack.c.bf16 %v441, %v439
      %v448 = vpack.c.bf16 %v442, %v440
      %v449 = vpack.c.bf16 %v445, %v443
      %v450 = vpack.c.bf16 %v446, %v444
      %v451 = vld [vmem:[%s3] sm:$0xf]
      %v452 = vld [vmem:[%s3 + $0x4] sm:$0xf]
      %v453 = vld [vmem:[%s3 + $0x8] sm:$0xf]
      %v454 = vld [vmem:[%s3 + $0xc] sm:$0xf]
      %v455 = vld [vmem:[%s3 + $0x10] sm:$0xf]
      %v456 = vld [vmem:[%s3 + $0x14] sm:$0xf]
      %v457 = vld [vmem:[%s3 + $0x18] sm:$0xf]
      %v458 = vld [vmem:[%s3 + $0x1c] sm:$0xf]
      %v459 = vld [vmem:[%s3 + $0x20] sm:$0xf]
      %v460 = vld [vmem:[%s3 + $0x24] sm:$0xf]
      %v461 = vld [vmem:[%s3 + $0x28] sm:$0xf]
      %v462 = vld [vmem:[%s3 + $0x2c] sm:$0xf]
      %v463 = vld [vmem:[%s3 + $0x30] sm:$0xf]
      %v464 = vld [vmem:[%s3 + $0x34] sm:$0xf]
      %v465 = vld [vmem:[%s3 + $0x38] sm:$0xf]
      %v466 = vld [vmem:[%s3 + $0x3c] sm:$0xf]
      %v467 = vld [vmem:[%s3 + $0x40] sm:$0xf]
      %v468 = vld [vmem:[%s3 + $0x44] sm:$0xf]
      %v469 = vld [vmem:[%s3 + $0x48] sm:$0xf]
      %v470 = vld [vmem:[%s3 + $0x4c] sm:$0xf]
      %v471 = vld [vmem:[%s3 + $0x50] sm:$0xf]
      %v472 = vld [vmem:[%s3 + $0x54] sm:$0xf]
      %v473 = vld [vmem:[%s3 + $0x58] sm:$0xf]
      %v474 = vld [vmem:[%s3 + $0x5c] sm:$0xf]
      %v475 = vld [vmem:[%s3 + $0x60] sm:$0xf]
      %v476 = vld [vmem:[%s4] sm:$0x1]
      %v478 = vlaneseq
      %v479 = vshrl.u32 %v478, 7
      %v480 = vsub.s32 0, %v479
      %v481 = vrot.slane %v476, %v480
      %v508 = vunpack.c.l.b16 %v451
      %v509 = vunpack.c.l.b16 %v452
      %v510 = vunpack.c.l.b16 %v453
      %v511 = vunpack.c.l.b16 %v454
      %v512 = vunpack.c.l.b16 %v455
      %v513 = vunpack.c.l.b16 %v456
      %v514 = vunpack.c.l.b16 %v457
      %v515 = vunpack.c.l.b16 %v458
      %v516 = vunpack.c.l.b16 %v459
      %v517 = vunpack.c.l.b16 %v460
      %v518 = vunpack.c.l.b16 %v461
      %v519 = vunpack.c.l.b16 %v462
      %v520 = vunpack.c.l.b16 %v463
      %v521 = vunpack.c.l.b16 %v464
      %v522 = vunpack.c.l.b16 %v465
      %v523 = vunpack.c.l.b16 %v466
      %v524 = vunpack.c.l.b16 %v467
      %v525 = vunpack.c.l.b16 %v468
      %v526 = vunpack.c.l.b16 %v469
      %v527 = vunpack.c.l.b16 %v470
      %v528 = vunpack.c.l.b16 %v471
      %v529 = vunpack.c.l.b16 %v472
      %v530 = vunpack.c.l.b16 %v473
      %v531 = vunpack.c.l.b16 %v474
      %v532 = vunpack.c.l.b16 %v475
      %v533 = vpack.c.b16 %v509, %v508
      %v534 = vpack.c.b16 %v511, %v510
      %v535 = vpack.c.b16 %v513, %v512
      %v536 = vpack.c.b16 %v515, %v514
      %v537 = vpack.c.b16 %v517, %v516
      %v538 = vpack.c.b16 %v519, %v518
      %v539 = vpack.c.b16 %v521, %v520
      %v540 = vpack.c.b16 %v523, %v522
      %v541 = vpack.c.b16 %v525, %v524
      %v542 = vpack.c.b16 %v527, %v526
      %v543 = vpack.c.b16 %v529, %v528
      %v544 = vpack.c.b16 %v531, %v530
      %v545 = vpack.c.b16 %v532, %v532
      %vm558 = vcmask 588800
      %v560 = vsel %vm558, %v448, 0
      %v563 = vsel %vm558, %v450, 0
      %vm565 = vcmask 1043456
      %v567 = vsel %vm565, %v545, 0
      %569 = vmatprep.subr.bf16.mxu0 0
      %570 = vmatpush1.bf16.msra.mxu0 %v540
      %571 = vmatprep.subr.bf16.mxu0 0
      %572 = vmatpush1.bf16.msra.mxu0 %v539
      %573 = vmatprep.subr.bf16.mxu0 0
      %574 = vmatpush1.bf16.msra.mxu0 %v538
      %575 = vmatprep.subr.bf16.mxu0 0
      %576 = vmatpush1.bf16.msra.mxu0 %v537
      %577 = vmatprep.subr.bf16.mxu0 0
      %578 = vmatpush1.bf16.msra.mxu0 %v536
      %579 = vmatprep.subr.bf16.mxu0 0
      %580 = vmatpush1.bf16.msra.mxu0 %v535
      %581 = vmatprep.subr.bf16.mxu0 0
      %582 = vmatpush1.bf16.msra.mxu0 %v534
      %583 = vmatprep.subr.bf16.mxu0 0
      %584 = vmatpush1.bf16.msra.mxu0 %v533
      %585 = vmatprep.subr.bf16.mxu0 0
      %586 = vmatpush2.bf16.msra.mxu0 0
      %587 = vmatprep.subr.bf16.mxu0 0
      %588 = vmatpush2.bf16.msra.mxu0 0
      %589 = vmatprep.subr.bf16.mxu0 0
      %590 = vmatpush2.bf16.msra.mxu0 0
      %591 = vmatprep.subr.bf16.mxu0 0
      %592 = vmatpush2.bf16.msra.mxu0 %v567
      %593 = vmatprep.subr.bf16.mxu0 0
      %594 = vmatpush2.bf16.msra.mxu0 %v544
      %595 = vmatprep.subr.bf16.mxu0 0
      %596 = vmatpush2.bf16.msra.mxu0 %v543
      %597 = vmatprep.subr.bf16.mxu0 0
      %598 = vmatpush2.bf16.msra.mxu0 %v542
      %599 = vmatprep.subr.bf16.mxu0 0
      %600 = vmatpush2.bf16.msra.mxu0 %v541
      %601 = vmatprep.mubr.bf16.mxu0 %v560
      %602 = vmatmul.mubr.bf16.gmra.mxu0 %v447
      %v603 = vpop.f32.mrf.mxu0
      %v604 = vadd.f32 %v481, %v603
      %v605 = vpop.f32.mrf.mxu0
      %v606 = vpop.f32.mrf.mxu0
      %v607 = vadd.f32 %v481, %v606
      %v608 = vpop.f32.mrf.mxu0
      %609 = vmatprep.mubr.bf16.mxu0 %v563
      %610 = vmatmul.mubr.bf16.gmra.mxu0 %v449
      %v611 = vpop.f32.mrf.mxu0
      %v612 = vadd.f32 %v481, %v611
      %v613 = vpop.f32.mrf.mxu0
      %v614 = vpop.f32.mrf.mxu0
      %v615 = vadd.f32 %v481, %v614
      %v616 = vpop.f32.mrf.mxu0
      %617 = vdwg.mxu0
      %v618 = vmax.f32 %v604, 0.0
      %v619 = vmax.f32 %v607, 0.0
      %v620 = vmax.f32 %v612, 0.0
      %v621 = vmax.f32 %v615, 0.0
      %v622 = vpack.c.bf16 %v619, %v618
      %v623 = vpack.c.bf16 %v621, %v620
      %v624 = vld [vmem:[%s5] sm:$0xf]
      %v625 = vld [vmem:[%s5 + $0x4] sm:$0xf]
      %v626 = vld [vmem:[%s5 + $0x8] sm:$0xf]
      %v627 = vld [vmem:[%s5 + $0xc] sm:$0xf]
      %v628 = vld [vmem:[%s5 + $0x10] sm:$0xf]
      %v629 = vld [vmem:[%s5 + $0x14] sm:$0xf]
      %v630 = vld [vmem:[%s5 + $0x18] sm:$0xf]
      %v631 = vld [vmem:[%s5 + $0x1c] sm:$0xf]
      %v632 = vld [vmem:[%s5 + $0x20] sm:$0xf]
      %v633 = vld [vmem:[%s5 + $0x24] sm:$0xf]
      %v634 = vld [vmem:[%s5 + $0x28] sm:$0xf]
      %v635 = vld [vmem:[%s5 + $0x2c] sm:$0xf]
      %v636 = vld [vmem:[%s5 + $0x30] sm:$0x3]
      %v637 = vld [vmem:[%s6] sm:$0x1]
      %v639 = vlaneseq
      %v640 = vshrl.u32 %v639, 7
      %v641 = vsub.s32 0, %v640
      %v642 = vrot.slane %v637, %v641
      %v657 = vunpack.c.l.b16 %v624
      %v658 = vunpack.c.l.b16 %v625
      %v659 = vunpack.c.l.b16 %v626
      %v660 = vunpack.c.l.b16 %v627
      %v661 = vunpack.c.l.b16 %v628
      %v662 = vunpack.c.l.b16 %v629
      %v663 = vunpack.c.l.b16 %v630
      %v664 = vunpack.c.l.b16 %v631
      %v665 = vunpack.c.l.b16 %v632
      %v666 = vunpack.c.l.b16 %v633
      %v667 = vunpack.c.l.b16 %v634
      %v668 = vunpack.c.l.b16 %v635
      %v669 = vunpack.c.l.b16 %v636
      %v670 = vpack.c.b16 %v658, %v657
      %v671 = vpack.c.b16 %v660, %v659
      %v672 = vpack.c.b16 %v662, %v661
      %v673 = vpack.c.b16 %v664, %v663
      %v674 = vpack.c.b16 %v666, %v665
      %v675 = vpack.c.b16 %v668, %v667
      %v676 = vpack.c.b16 %v669, %v669
      %vm683 = vcmask 818176
      %v685 = vsel %vm683, %v622, 0
      %v688 = vsel %vm683, %v623, 0
      %vm690 = vcmask 1041408
      %v692 = vsel %vm690, %v676, 0
      %694 = vmatprep.subr.bf16.mxu0 0
      %695 = vmatpush1.bf16.msra.mxu0 0
      %696 = vmatprep.subr.bf16.mxu0 0
      %697 = vmatpush1.bf16.msra.mxu0 %v692
      %698 = vmatprep.subr.bf16.mxu0 0
      %699 = vmatpush1.bf16.msra.mxu0 %v675
      %700 = vmatprep.subr.bf16.mxu0 0
      %701 = vmatpush1.bf16.msra.mxu0 %v674
      %702 = vmatprep.subr.bf16.mxu0 0
      %703 = vmatpush1.bf16.msra.mxu0 %v673
      %704 = vmatprep.subr.bf16.mxu0 0
      %705 = vmatpush1.bf16.msra.mxu0 %v672
      %706 = vmatprep.subr.bf16.mxu0 0
      %707 = vmatpush1.bf16.msra.mxu0 %v671
      %708 = vmatprep.subr.bf16.mxu0 0
      %709 = vmatpush1.bf16.msra.mxu0 %v670
      %710 = vmatprep.subr.bf16.mxu0 0
      %711 = vmatpush2.bf16.msra.mxu0 0
      %712 = vmatprep.subr.bf16.mxu0 0
      %713 = vmatpush2.bf16.msra.mxu0 0
      %714 = vmatprep.subr.bf16.mxu0 0
      %715 = vmatpush2.bf16.msra.mxu0 0
      %716 = vmatprep.subr.bf16.mxu0 0
      %717 = vmatpush2.bf16.msra.mxu0 0
      %718 = vmatprep.subr.bf16.mxu0 0
      %719 = vmatpush2.bf16.msra.mxu0 0
      %720 = vmatprep.subr.bf16.mxu0 0
      %721 = vmatpush2.bf16.msra.mxu0 0
      %722 = vmatprep.subr.bf16.mxu0 0
      %723 = vmatpush2.bf16.msra.mxu0 0
      %724 = vmatprep.subr.bf16.mxu0 0
      %725 = vmatpush2.bf16.msra.mxu0 0
      %726 = vmatprep.mubr.bf16.mxu0 0
      %727 = vmatmul.mubr.bf16.gmra.mxu0 %v685
      %v728 = vpop.f32.mrf.mxu0
      %v729 = vadd.f32 %v642, %v728
      %v730 = vpop.f32.mrf.mxu0
      %v731 = vpop.f32.mrf.mxu0
      %v732 = vadd.f32 %v642, %v731
      %v733 = vpop.f32.mrf.mxu0
      %734 = vmatprep.mubr.bf16.mxu0 0
      %735 = vmatmul.mubr.bf16.gmra.mxu0 %v688
      %v736 = vpop.f32.mrf.mxu0
      %v737 = vadd.f32 %v642, %v736
      %v738 = vpop.f32.mrf.mxu0
      %v739 = vpop.f32.mrf.mxu0
      %v740 = vadd.f32 %v642, %v739
      %v741 = vpop.f32.mrf.mxu0
      %742 = vdwg.mxu0
      %v743 = vmax.f32 %v729, 0.0
      %v744 = vmax.f32 %v732, 0.0
      %v745 = vmax.f32 %v737, 0.0
      %v746 = vmax.f32 %v740, 0.0
      %v747 = vld [vmem:[%s7] sm:$0x1]
      %v749 = vlaneseq
      %v750 = vshrl.u32 %v749, 7
      %v751 = vsub.s32 0, %v750
      %v752 = vrot.slane %v747, %v751
      %v754 = vmul.f32 %v743, %v752
      %v755 = vmul.f32 %v744, %v752
      %v756 = vmul.f32 %v745, %v752
      %v757 = vmul.f32 %v746, %v752
      %vm758 = vcmask 408576
      %v759 = vsel %vm758, %v754, 0.0
      %760 = vadd.xlane.f32.xlu0 %v759
      %v761 = vpop.xlane.xlu0 %760
      %v762 = vsel %vm758, %v755, 0.0
      %763 = vadd.xlane.f32.xlu0 %v762
      %v764 = vpop.xlane.xlu0 %763
      %v765 = vsel %vm758, %v756, 0.0
      %766 = vadd.xlane.f32.xlu0 %v765
      %v767 = vpop.xlane.xlu0 %766
      %v768 = vsel %vm758, %v757, 0.0
      %769 = vadd.xlane.f32.xlu0 %v768
      %v770 = vpop.xlane.xlu0 %769
      %v771 = vld [vmem:[%s8] sm:$0x1]
      %v773 = vlaneseq
      %v774 = vshrl.u32 %v773, 7
      %v775 = vsub.s32 0, %v774
      %v776 = vrot.slane %v771, %v775
      %v778 = vadd.f32 %v761, %v776
      %v779 = vadd.f32 %v764, %v776
      %v780 = vadd.f32 %v767, %v776
      %v781 = vadd.f32 %v770, %v776
      %vm782 = vcmask 48128
      %783 = vst.msk [vmem:[%s334] sm:$0xff] %vm782, %v778
      %784 = vst.msk [vmem:[%s334 + $0x8] sm:$0xff] %vm782, %v779
      %785 = vst.msk [vmem:[%s334 + $0x10] sm:$0xff] %vm782, %v780
      %786 = vst.msk [vmem:[%s334 + $0x18] sm:$0xff] %vm782, %v781
      %s787 = smul.u32 4, %s20
      %p788 = scmp.lt.s32.totalorder %s787, 7
      %s789 = scalar_select %p788, %s787, 7
      %s790 = smul.addr %s789, 8
      %s791 = scalar_lea.vmem %s9, %s790
      // Predicated region
      $region57: #{tpu_custom_call.1} parent=55 // pred_check
        %p792 = pneg %p232
      $region58: #{tpu_custom_call.1} parent=55 // pred_check_branch
        %794 = sbr.rel (%p792) target = $region60
      $region59: #{tpu_custom_call.1} parent=55 // pred_region
        %s795 = smul.u32 4, %s20
      $region60: #{tpu_custom_call.1} parent=55 // pred_fallthru
        _
    $region56: #{tpu_custom_call.1} parent=5 // pred_fallthru
      _
    %p796 = scmp.le.s32.totalorder 2, %s15
    // Predicated region
    $region61: #{tpu_custom_call.1} parent=5 // pred_check
      %p797 = pneg %p796
    $region62: #{tpu_custom_call.1} parent=5 // pred_check_branch
      %799 = sbr.rel (%p797) target = $region64
    $region63: #{tpu_custom_call.1} parent=5 // pred_region
      %s800 = ssub.s32 %s15, 2
      // Predicated region
      $region65: #{tpu_custom_call.1} parent=63 // pred_check
        %p801 = pneg %p238
      $region66: #{tpu_custom_call.1} parent=63 // pred_check_branch
        %803 = sbr.rel (%p801) target = $region68
      $region67: #{tpu_custom_call.1} parent=63 // pred_region
        %s804 = smul.u32 4, %s21
        %p805 = scmp.lt.s32.totalorder %s804, 7
        %s806 = scalar_select %p805, %s804, 7
        %s807 = smul.addr %s806, 8
        %s808 = scalar_lea.vmem %s9, %s807
      $region68: #{tpu_custom_call.1} parent=63 // pred_fallthru
        _
    $region64: #{tpu_custom_call.1} parent=5 // pred_fallthru
      _
  $region6: #{tpu_custom_call.1} parent=0 // loop_footer
    %s19 = sadd.s32 1, %s15
  $region7: #{tpu_custom_call.1} parent=0 // loop_footer_branch
    %14 = sbr.rel target = $region3
  $region8: #{tpu_custom_call.1} parent=0 // loop_exit
    _

</llo_original>
